<compile_context>
chip_gen: v7x
topology: tpu7x:2x2x1
jax: 0.10.0
libtpu: 0.0.40
codegen_flags: <defaults>
</compile_context>

<pallas_src>
import functools
import math

import jax
import jax.numpy as jnp
from jax.experimental import pallas as pl
from jax.experimental.pallas import tpu as pltpu


# ----------------------------------------------------------------------------
# Kernel
# ----------------------------------------------------------------------------
def _contrastive_kernel(bias_ref, x_ref, w_ref, o_ref):
    """One (batch, spatial-tile) step.

    bias_ref : SMEM (1,)        f32   bias
    x_ref    : VMEM (1, C, TN)        image features (channels on sublanes, spatial on lanes)
    w_ref    : VMEM (1, K, C)   bf16  pre-normalized, logit-scaled text embeddings
    o_ref    : VMEM (1, K, TN)        region-text scores
    """
    x = x_ref[0].astype(jnp.float32)                                          # (C, TN)

    # L2-normalize x over channels (per spatial position), f32.
    # TODO(synk): torch F.normalize clamps the norm at eps; we use rsqrt(sum_sq + 1e-12)
    # (identical for non-degenerate inputs, and finite on zero-padded columns).
    x_inv = jax.lax.rsqrt(jnp.sum(x * x, axis=0, keepdims=True) + 1e-12)      # (1, TN)
    xn = (x * x_inv).astype(jnp.bfloat16)                                     # (C, TN)

    # MXU matmul, bf16 operands, f32 accumulation: (K, C) @ (C, TN) -> (K, TN).
    # exp(logit_scale) is already folded into w, so the epilogue is just +bias.
    s = jnp.dot(w_ref[0], xn, preferred_element_type=jnp.float32)
    o_ref[0] = (s + bias_ref[0]).astype(o_ref.dtype)


# ----------------------------------------------------------------------------
# Tile / VMEM sizing helpers
# ----------------------------------------------------------------------------
def _vmem_budget_bytes():
    """Generation-aware VMEM budget (leave headroom for compiler scratch)."""
    phys = 128 * 1024 * 1024
    try:
        info = pltpu.get_tpu_info()
        phys = int(getattr(info, "vmem_capacity_bytes", phys))
    except Exception:
        pass
    if phys <= 64 * 1024 * 1024:          # v7x-class TensorCore (64 MiB)
        return 40 * 1024 * 1024
    return 96 * 1024 * 1024               # v5e / v6e (128 MiB)


def _tile_footprint_bytes(tn, c, k, x_bytes, out_bytes):
    """Rough per-step VMEM use: double-buffered I/O tiles + in-kernel f32 temporaries."""
    x_tiles = 2 * c * tn * x_bytes        # double-buffered x input
    o_tiles = 2 * k * tn * out_bytes      # double-buffered output
    w_tiles = 2 * k * c * 2               # bf16 w (resident, but budget both buffers)
    temps = 4 * c * tn * 4                # x_f32, x*x, xn, bf16 cast staging (generous)
    return x_tiles + o_tiles + w_tiles + temps


def _pick_tile(n_pad, b, c, k, x_bytes, out_bytes, budget):
    """Largest 128-multiple divisor of n_pad that fits VMEM and keeps >= 4 grid steps."""
    blocks = n_pad // 128
    divs = sorted({d for d in range(1, blocks + 1) if blocks % d == 0}, reverse=True)
    cands = [128 * d for d in divs]
    fitting = [t for t in cands
               if _tile_footprint_bytes(t, c, k, x_bytes, out_bytes) <= budget]
    if not fitting:
        fitting = [128]
    for t in fitting:                     # biggest tile with enough steps for pipelining
        if b * (n_pad // t) >= 4:
            return t
    return fitting[-1]                    # otherwise maximize step count


# ----------------------------------------------------------------------------
# Wrapper
# ----------------------------------------------------------------------------
def contrastive_head(x_nchw, w_bkc, logit_scale, bias, *, n_tile=None):
    """x_nchw: (B, C, H, W), w_bkc: (B, K, C) -> (B, K, H, W)."""
    B, C, H, W = x_nchw.shape
    Bw, K, Cw = w_bkc.shape
    assert B == Bw and C == Cw, (x_nchw.shape, w_bkc.shape)
    N = H * W

    # Free reshape (no transpose): spatial positions become the lane dimension.
    x = x_nchw.reshape(B, C, N)

    # Zero-pad N to a multiple of 128 so every tile is lane-dense (unmasked vst, clean DMA).
    N_pad = ((N + 127) // 128) * 128
    if N_pad != N:
        x = jnp.pad(x, ((0, 0), (0, 0), (0, N_pad - N)))

    out_dtype = x_nchw.dtype
    x_bytes = jnp.dtype(x.dtype).itemsize
    out_bytes = jnp.dtype(out_dtype).itemsize
    budget = _vmem_budget_bytes()
    if n_tile is None:
        n_tile = _pick_tile(N_pad, B, C, K, x_bytes, out_bytes, budget)
    grid = (B, N_pad // n_tile)

    # Hoisted out of the kernel: L2-normalize w over the embedding dim, fold in
    # exp(logit_scale), cast to bf16 once. (B*K*C elements -> negligible vs x traffic.)
    w_f32 = w_bkc.astype(jnp.float32)
    w_inv = jax.lax.rsqrt(jnp.sum(w_f32 * w_f32, axis=-1, keepdims=True) + 1e-12)
    wn = (w_f32 * w_inv * jnp.exp(logit_scale).astype(jnp.float32)).astype(jnp.bfloat16)

    bias_arr = bias.reshape((1,)).astype(jnp.float32)     # runtime scalar -> SMEM

    out = pl.pallas_call(
        _contrastive_kernel,
        out_shape=jax.ShapeDtypeStruct((B, K, N_pad), out_dtype),
        grid=grid,
        in_specs=[
            pl.BlockSpec(memory_space=pltpu.MemorySpace.SMEM),          # bias scalar
            pl.BlockSpec((1, C, n_tile), lambda b, n: (b, 0, n)),       # x tile
            pl.BlockSpec((1, K, C), lambda b, n: (b, 0, 0)),            # wn (per batch)
        ],
        out_specs=pl.BlockSpec((1, K, n_tile), lambda b, n: (b, 0, n)),
        compiler_params=pltpu.CompilerParams(
            dimension_semantics=("parallel", "parallel"),
            vmem_limit_bytes=budget,
        ),
    )(bias_arr, x, wn)

    if N_pad != N:
        out = out[:, :, :N]
    return out.reshape(B, K, H, W)


# ----------------------------------------------------------------------------
# Demo / self-check
# ----------------------------------------------------------------------------
def _reference(x, w, logit_scale, bias):
    xn = x * jax.lax.rsqrt(jnp.sum(x * x, axis=1, keepdims=True) + 1e-12)
    wn = w * jax.lax.rsqrt(jnp.sum(w * w, axis=-1, keepdims=True) + 1e-12)
    return jnp.einsum("bchw,bkc->bkhw", xn, wn) * jnp.exp(logit_scale) + bias[0]


if __name__ == "__main__":
    key = jax.random.PRNGKey(0)

    # Parameters exactly as in the PyTorch module's __init__.
    bias = jnp.array([-10.0], jnp.float32)
    logit_scale = jnp.array(math.log(1.0 / 0.07), jnp.float32)

    fwd = jax.jit(functools.partial(contrastive_head))

    # Case 1: lane-aligned spatial size (N = 256).
    B, C, H, W, K = 2, 64, 16, 16, 16
    kx, kw = jax.random.split(key)
    x = jax.random.normal(kx, (B, C, H, W), jnp.float32)
    w = jax.random.normal(kw, (B, K, C), jnp.float32)
    out = jax.block_until_ready(fwd(x, w, logit_scale, bias))
    ref = _reference(x, w, logit_scale, bias)
    assert out.shape == (B, K, H, W), out.shape
    assert jnp.all(jnp.isfinite(out))
    err = float(jnp.max(jnp.abs(out - ref)))
    # bf16 MXU operands on unit-norm vectors scaled by exp(logit_scale) ~= 14.3.
    assert err < 0.15, err

    # Case 2: N not a multiple of 128 (10x10 = 100) -> exercises the zero-padding path.
    B2, C2, H2, W2, K2 = 2, 32, 10, 10, 8
    kx2, kw2 = jax.random.split(kw)
    x2 = jax.random.normal(kx2, (B2, C2, H2, W2), jnp.float32)
    w2 = jax.random.normal(kw2, (B2, K2, C2), jnp.float32)
    out2 = jax.block_until_ready(jax.jit(contrastive_head)(x2, w2, logit_scale, bias))
    ref2 = _reference(x2, w2, logit_scale, bias)
    assert out2.shape == (B2, K2, H2, W2), out2.shape
    assert jnp.all(jnp.isfinite(out2))
    err2 = float(jnp.max(jnp.abs(out2 - ref2)))
    assert err2 < 0.15, err2

    print("KERNEL_OK")
</pallas_src>

<mosaic_0001>
module attributes {stable_mosaic.version = 11 : i64} {
  func.func @_contrastive_kernel(%arg0: i32, %arg1: i32, %arg2: memref<1xf32, #tpu.memory_space<smem>>, %arg3: memref<1x64x128xf32, #tpu.memory_space<vmem>>, %arg4: memref<1x16x64xbf16, #tpu.memory_space<vmem>>, %arg5: memref<1x16x128xf32, #tpu.memory_space<vmem>>) attributes {dimension_semantics = [#tpu.dimension_semantics<parallel>, #tpu.dimension_semantics<parallel>], iteration_bounds = array<i64: 2, 2>, scalar_prefetch = 0 : i64, scratch_operands = 0 : i64, tpu.core_type = #tpu.core_type<tc>, window_params = [{transform_indices = @transform_0, window_bounds = array<i64: 1>}, {transform_indices = @transform_1, window_bounds = array<i64: 1, 64, 128>}, {transform_indices = @transform_2, window_bounds = array<i64: 1, 16, 64>}, {transform_indices = @transform_3, window_bounds = array<i64: 1, 16, 128>}]} {
    %c0 = arith.constant 0 : index
    %c0_0 = arith.constant 0 : index
    %c0_1 = arith.constant 0 : index
    %0 = vector.load %arg3[%c0, %c0_0, %c0_1] : memref<1x64x128xf32, #tpu.memory_space<vmem>>, vector<1x64x128xf32>
    %1 = vector.shape_cast %0 : vector<1x64x128xf32> to vector<64x128xf32>
    %2 = arith.mulf %1, %1 : vector<64x128xf32>
    %cst = arith.constant dense<0.000000e+00> : vector<128xf32>
    %3 = vector.multi_reduction <add>, %2, %cst [0] : vector<64x128xf32> to vector<128xf32>
    %4 = vector.shape_cast %3 : vector<128xf32> to vector<1x128xf32>
    %cst_2 = arith.constant 9.99999996E-13 : f32
    %5 = vector.broadcast %cst_2 : f32 to vector<1x128xf32>
    %6 = arith.addf %4, %5 : vector<1x128xf32>
    %7 = math.rsqrt %6 : vector<1x128xf32>
    %8 = vector.broadcast %7 : vector<1x128xf32> to vector<64x128xf32>
    %9 = arith.mulf %1, %8 : vector<64x128xf32>
    %10 = arith.truncf %9 : vector<64x128xf32> to vector<64x128xbf16>
    %c0_3 = arith.constant 0 : index
    %c0_4 = arith.constant 0 : index
    %c0_5 = arith.constant 0 : index
    %11 = vector.load %arg4[%c0_3, %c0_4, %c0_5] : memref<1x16x64xbf16, #tpu.memory_space<vmem>>, vector<1x16x64xbf16>
    %12 = vector.shape_cast %11 : vector<1x16x64xbf16> to vector<16x64xbf16>
    %cst_6 = arith.constant dense<0.000000e+00> : vector<16x128xf32>
    %13 = tpu.matmul %12, %10, %cst_6 {dimension_numbers = #tpu.dot_dimension_numbers<[1], [0], [0], [1], [0, 0, 1, 1], [], []>} : vector<16x64xbf16>, vector<64x128xbf16>, vector<16x128xf32> -> vector<16x128xf32>
    %c0_7 = arith.constant 0 : index
    %14 = memref.load %arg2[%c0_7] : memref<1xf32, #tpu.memory_space<smem>>
    %15 = vector.broadcast %14 : f32 to vector<16x128xf32>
    %16 = arith.addf %13, %15 : vector<16x128xf32>
    %c0_8 = arith.constant 0 : index
    %c0_9 = arith.constant 0 : index
    %c0_10 = arith.constant 0 : index
    %17 = vector.load %arg5[%c0_8, %c0_9, %c0_10] : memref<1x16x128xf32, #tpu.memory_space<vmem>>, vector<1x16x128xf32>
    %18 = vector.shape_cast %17 : vector<1x16x128xf32> to vector<16x128xf32>
    %19 = vector.shape_cast %16 : vector<16x128xf32> to vector<1x16x128xf32>
    tpu.vector_store %arg5[%c0_8, %c0_9, %c0_10], %19 {strides = array<i32>} : memref<1x16x128xf32, #tpu.memory_space<vmem>>, vector<1x16x128xf32>,
    return
  }
  func.func @transform_0(%arg0: i32, %arg1: i32) -> i32 {
    %c0_i32 = arith.constant 0 : i32
    %c0_i32_0 = arith.constant 0 : i32
    return %c0_i32 : i32
  }
  func.func @transform_1(%arg0: i32, %arg1: i32) -> (i32, i32, i32) {
    %c0_i32 = arith.constant 0 : i32
    %c0_i32_0 = arith.constant 0 : i32
    return %arg0, %c0_i32, %arg1 : i32, i32, i32
  }
  func.func @transform_2(%arg0: i32, %arg1: i32) -> (i32, i32, i32) {
    %c0_i32 = arith.constant 0 : i32
    %c0_i32_0 = arith.constant 0 : i32
    %c0_i32_1 = arith.constant 0 : i32
    return %arg0, %c0_i32, %c0_i32_0 : i32, i32, i32
  }
  func.func @transform_3(%arg0: i32, %arg1: i32) -> (i32, i32, i32) {
    %c0_i32 = arith.constant 0 : i32
    %c0_i32_0 = arith.constant 0 : i32
    return %arg0, %c0_i32, %arg1 : i32, i32, i32
  }
}

</mosaic_0001>

<llo_original>
// kernel: contrastive_head.1
$region0: #{contrastive_head.1}
  #allocation0 [shape = 'u32[]', space=smem, size = 0x4, offset = 0x4, fixed_abs, tag = 'smem constant byte address 0x4 - core index']
  #allocation1 [shape = 'u32[144,128]{1,0:T(1,128)}', space=vmem, size = 0x12000, scoped, tag = 'internal scratch']
  #allocation2 [shape = 'f32[1]{0:T(128)S(6)}', space=smem, size = 0x200, scoped, tag = 'scoped memory for contrastive_head.1']
  %s0 = inlined_call_operand.<no memory space> [shape: f32[1], index: 0, kind: input, shape index: {}]
  %s1 = inlined_call_operand.hbm [shape: f32[2,64,256], index: 1, kind: input, shape index: {}]
  %s2 = inlined_call_operand.hbm [shape: bf16[2,16,64], index: 2, kind: input, shape index: {}]
  %s3 = inlined_call_operand.hbm [shape: f32[2,16,256], index: 3, kind: output, shape index: {}]
  %s4 = sld [smem:[#allocation0]]
  $region53: #{contrastive_head.1} parent=0
    _
  %s6 = ssub.s32 1, %s4
  %s7 = scalar_select 0, %s6, %s4
  %8 = sst [smem:[#allocation2]] %s0
  $region1: #{contrastive_head.1} parent=0
    #allocation3 [shape = 'u8[65536]{0}', space=vmem, size = 0x10000, scoped, tag = 'input window, operand 1']
    #allocation4 [shape = 's32[2]{0}', space=sflag, size = 0x8, scoped, tag = 'scoped memory for contrastive_head.1']
    #allocation5 [shape = 's32[2]{0}', space=sflag, size = 0x8, scoped, tag = 'scoped memory for contrastive_head.1']
    #allocation6 [shape = 'u8[8192]{0}', space=vmem, size = 0x2000, scoped, tag = 'input window, operand 2']
    #allocation7 [shape = 's32[2]{0}', space=sflag, size = 0x8, scoped, tag = 'scoped memory for contrastive_head.1']
    #allocation8 [shape = 'u8[16384]{0}', space=vmem, size = 0x4000, scoped, tag = 'output window, operand 0']
    %9 = vsyncpa [#allocation4], 0
    %s10 = scalar_lea.sflag [#allocation4], 1
    %11 = vsyncpa %s10, 0
    %12 = vsyncpa [#allocation7], 0
    %s13 = scalar_lea.sflag [#allocation7], 1
    %14 = vsyncpa %s13, 0
    %15 = vsyncpa [#allocation5], 0
    %s16 = scalar_lea.sflag [#allocation5], 1
    %17 = vsyncpa %s16, 0
    loop: start=0, step=1, limit=6
    $region2: #{contrastive_head.1} parent=1 // loop_pre_header
      _
    $region3: #{contrastive_head.1} parent=1 // loop_header
      %s19 = sphi 0, %s23
      %p20 = scmp.ge.s32.totalorder %s19, 6
      %s26 = sphi 0, %s38
      %s27 = sphi 0, %s34
      %s28 = sphi 0, %s26
      %s29 = sphi 0, %s27
      %s30 = sphi 0, %s28
      %s31 = sphi 0, %s29
      %s39 = sphi 0, %s39
      %s41 = sphi 0, %s39
      %s42 = sphi 0, %s41
      %s56 = sphi 0, %s42
      %s64 = sphi 0, %s66
      %s67 = sphi 0, %s64
      %s68 = sphi 0, %s67
      %s84 = sphi 0, %s68
      %s90 = sphi 0, %s92
      %s93 = sphi 0, %s90
      %s94 = sphi 0, %s93
      %s110 = sphi 0, %s94
      %s118 = sphi 0, %s120
      %s121 = sphi 0, %s118
      %s122 = sphi 0, %s121
      %s138 = sphi 0, %s122
    $region4: #{contrastive_head.1} parent=1 // loop_header_branch
      %22 = sbr.rel (%p20) target = $region8
    $region5: #{contrastive_head.1} parent=1 // loop_body
      %s24 = ssub.s32 %s19, 1
      %s25 = ssub.s32 %s19, 2
      %s32 = sadd.s32 1, %s27
      %p33 = scmp.ge.s32.totalorder %s32, 2
      %s34 = scalar_select %p33, 0, %s32
      %s35 = sadd.s32 1, %s26
      %s36 = scalar_select %p33, %s35, %s26
      %p37 = scmp.ge.s32.totalorder %s36, 2
      %s38 = scalar_select %p37, 0, %s36
      %s40 = sadd.s32 %s39, 1
      %p43 = scmp.eq.s32.totalorder %s19, 3
      %p44 = scmp.ne.s32.totalorder %s39, %s41
      %p45 = scmp.eq.s32.totalorder %s19, 0
      %p46 = por %p44, %p45
      %p47 = scmp.ne.s32.totalorder %s39, %s41
      %p48 = scmp.eq.s32.totalorder %s24, 3
      %p49 = por %p47, %p48
      %p50 = scmp.ne.s32.totalorder %s41, %s42
      %p51 = scmp.eq.s32.totalorder %s24, 0
      %p52 = por %p50, %p51
      %p53 = scmp.ne.s32.totalorder %s41, %s42
      %p54 = scmp.eq.s32.totalorder %s25, 3
      %p55 = por %p53, %p54
      %p57 = scmp.ne.s32.totalorder %s42, %s56
      %p58 = scmp.eq.s32.totalorder %s25, 0
      %p59 = por %p57, %p58
      %s60 = ssub.s32 %s26, %s38
      %s61 = ssub.s32 %s27, %s34
      %s62 = sor.u32 %s60, %s61
      %p63 = scmp.eq.s32.totalorder %s62, 0
      %s65 = sadd.s32 %s64, 1
      %s66 = scalar_select %p63, %s64, %s65
      %p69 = pneg %p63
      %p70 = scmp.eq.s32.totalorder %s19, 3
      %p71 = por %p69, %p70
      %p72 = scmp.ne.s32.totalorder %s64, %s67
      %p73 = scmp.eq.s32.totalorder %s19, 0
      %p74 = por %p72, %p73
      %p75 = scmp.ne.s32.totalorder %s64, %s67
      %p76 = scmp.eq.s32.totalorder %s24, 3
      %p77 = por %p75, %p76
      %p78 = scmp.ne.s32.totalorder %s67, %s68
      %p79 = scmp.eq.s32.totalorder %s24, 0
      %p80 = por %p78, %p79
      %p81 = scmp.ne.s32.totalorder %s67, %s68
      %p82 = scmp.eq.s32.totalorder %s25, 3
      %p83 = por %p81, %p82
      %p85 = scmp.ne.s32.totalorder %s68, %s84
      %p86 = scmp.eq.s32.totalorder %s25, 0
      %p87 = por %p85, %p86
      %s88 = ssub.s32 %s26, %s38
      %p89 = scmp.eq.s32.totalorder %s88, 0
      %s91 = sadd.s32 %s90, 1
      %s92 = scalar_select %p89, %s90, %s91
      %p95 = pneg %p89
      %p96 = scmp.eq.s32.totalorder %s19, 3
      %p97 = por %p95, %p96
      %p98 = scmp.ne.s32.totalorder %s90, %s93
      %p99 = scmp.eq.s32.totalorder %s19, 0
      %p100 = por %p98, %p99
      %p101 = scmp.ne.s32.totalorder %s90, %s93
      %p102 = scmp.eq.s32.totalorder %s24, 3
      %p103 = por %p101, %p102
      %p104 = scmp.ne.s32.totalorder %s93, %s94
      %p105 = scmp.eq.s32.totalorder %s24, 0
      %p106 = por %p104, %p105
      %p107 = scmp.ne.s32.totalorder %s93, %s94
      %p108 = scmp.eq.s32.totalorder %s25, 3
      %p109 = por %p107, %p108
      %p111 = scmp.ne.s32.totalorder %s94, %s110
      %p112 = scmp.eq.s32.totalorder %s25, 0
      %p113 = por %p111, %p112
      %s114 = ssub.s32 %s26, %s38
      %s115 = ssub.s32 %s27, %s34
      %s116 = sor.u32 %s114, %s115
      %p117 = scmp.eq.s32.totalorder %s116, 0
      %s119 = sadd.s32 %s118, 1
      %s120 = scalar_select %p117, %s118, %s119
      %p123 = pneg %p117
      %p124 = scmp.eq.s32.totalorder %s19, 3
      %p125 = por %p123, %p124
      %p126 = scmp.ne.s32.totalorder %s118, %s121
      %p127 = scmp.eq.s32.totalorder %s19, 0
      %p128 = por %p126, %p127
      %p129 = scmp.ne.s32.totalorder %s118, %s121
      %p130 = scmp.eq.s32.totalorder %s24, 3
      %p131 = por %p129, %p130
      %p132 = scmp.ne.s32.totalorder %s121, %s122
      %p133 = scmp.eq.s32.totalorder %s24, 0
      %p134 = por %p132, %p133
      %p135 = scmp.ne.s32.totalorder %s121, %s122
      %p136 = scmp.eq.s32.totalorder %s25, 3
      %p137 = por %p135, %p136
      %p139 = scmp.ne.s32.totalorder %s122, %s138
      %p140 = scmp.eq.s32.totalorder %s25, 0
      %p141 = por %p139, %p140
      %p142 = scmp.le.s32.totalorder 1, %s19
      %p143 = scmp.lt.s32.totalorder %s19, 5
      %p144 = pnand %p142, %p143
      %p145 = pneg %p144
      // Predicated region
      $region9: #{contrastive_head.1} parent=5 // pred_check
        _
      $region10: #{contrastive_head.1} parent=5 // pred_check_branch
        %147 = sbr.rel (%p144) target = $region12
      $region11: #{contrastive_head.1} parent=5 // pred_region
        %s148 = ssub.s32 %s19, 1
        // Predicated region
        $region13: #{contrastive_head.1} parent=11 // pred_check
          %p149 = pneg %p52
        $region14: #{contrastive_head.1} parent=11 // pred_check_branch
          %151 = sbr.rel (%p149) target = $region16
        $region15: #{contrastive_head.1} parent=11 // pred_region
          _
        $region16: #{contrastive_head.1} parent=11 // pred_fallthru
          _
      $region12: #{contrastive_head.1} parent=5 // pred_fallthru
        _
      %p152 = scmp.lt.s32.totalorder %s19, 4
      // Predicated region
      $region17: #{contrastive_head.1} parent=5 // pred_check
        %p153 = pneg %p152
      $region18: #{contrastive_head.1} parent=5 // pred_check_branch
        %155 = sbr.rel (%p153) target = $region20
      $region19: #{contrastive_head.1} parent=5 // pred_region
        // Predicated region
        $region21: #{contrastive_head.1} parent=19 // pred_check
          %p156 = pneg %p74
        $region22: #{contrastive_head.1} parent=19 // pred_check_branch
          %158 = sbr.rel (%p156) target = $region24
        $region23: #{contrastive_head.1} parent=19 // pred_region
          %s159 = sand.u32 %s64, 1
          %s160 = scalar_lea.sflag [#allocation4], %s159
          %s161 = sand.u32 %s64, 1
          %s162 = smul.addr %s161, 64
          %s163 = scalar_lea.vmem [#allocation3], %s162
          %s165 = ssub.s32 1024, 1024
          %166 = vsyncadd %s160, %s165
          %s167 = smul.addr %s26, 16
          %s168 = sadd.s32 %s27, %s167
          %s169 = smul.addr %s168, 128
          %s170 = scalar_lea.hbm %s1, %s169
          %s171 = sshll.u32 %s163, 4
          %s172 = int_to_ptr.vmem [resolvable:$true] %s171
          %177 = dma.hbm_to_vmem [thread:$0]  %s170, 1024, %s172, %s160, 256, 128, 8
        $region24: #{contrastive_head.1} parent=19 // pred_fallthru
          _
        // Predicated region
        $region25: #{contrastive_head.1} parent=19 // pred_check
          %p178 = pneg %p100
        $region26: #{contrastive_head.1} parent=19 // pred_check_branch
          %180 = sbr.rel (%p178) target = $region28
        $region27: #{contrastive_head.1} parent=19 // pred_region
          %s181 = sand.u32 %s90, 1
          %s182 = scalar_lea.sflag [#allocation7], %s181
          %s183 = sand.u32 %s90, 1
          %s184 = smul.addr %s183, 8
          %s185 = scalar_lea.vmem [#allocation6], %s184
          %s187 = ssub.s32 128, 128
          %188 = vsyncadd %s182, %s187
          %s189 = smul.addr %s26, 2
          %s190 = smul.addr %s189, 64
          %s191 = scalar_lea.hbm %s2, %s190
          %s192 = sshll.u32 %s185, 4
          %s193 = int_to_ptr.vmem [resolvable:$true] %s192
          %198 = dma.hbm_to_vmem [thread:$0]  %s191, 128, %s193, %s182, 64, 64, 4
        $region28: #{contrastive_head.1} parent=19 // pred_fallthru
          _
      $region20: #{contrastive_head.1} parent=5 // pred_fallthru
        _
      %p199 = scmp.le.s32.totalorder 1, %s19
      %p200 = scmp.lt.s32.totalorder %s19, 5
      %p201 = pnand %p199, %p200
      %p202 = pneg %p201
      // Predicated region
      $region29: #{contrastive_head.1} parent=5 // pred_check
        _
      $region30: #{contrastive_head.1} parent=5 // pred_check_branch
        %204 = sbr.rel (%p201) target = $region32
      $region31: #{contrastive_head.1} parent=5 // pred_region
        %s205 = ssub.s32 %s19, 1
        %s206 = sand.u32 %s67, 1
        %s207 = scalar_lea.sflag [#allocation4], %s206
        %s208 = sand.u32 %s67, 1
        %s209 = smul.addr %s208, 64
        %s210 = scalar_lea.vmem [#allocation3], %s209
        // Predicated region
        $region33: #{contrastive_head.1} parent=31 // pred_check
          %p211 = pneg %p80
        $region34: #{contrastive_head.1} parent=31 // pred_check_branch
          %213 = sbr.rel (%p211) target = $region36
        $region35: #{contrastive_head.1} parent=31 // pred_region
          %214 = dma.done %s207, 1024
        $region36: #{contrastive_head.1} parent=31 // pred_fallthru
          _
        %s215 = sand.u32 %s93, 1
        %s216 = scalar_lea.sflag [#allocation7], %s215
        %s217 = sand.u32 %s93, 1
        %s218 = smul.addr %s217, 8
        %s219 = scalar_lea.vmem [#allocation6], %s218
        // Predicated region
        $region37: #{contrastive_head.1} parent=31 // pred_check
          %p220 = pneg %p106
        $region38: #{contrastive_head.1} parent=31 // pred_check_branch
          %222 = sbr.rel (%p220) target = $region40
        $region39: #{contrastive_head.1} parent=31 // pred_region
          %223 = dma.done %s216, 128
        $region40: #{contrastive_head.1} parent=31 // pred_fallthru
          _
        %p224 = pneg %p52
        %p225 = pneg %p49
        %s226 = sand.u32 %s67, 1
        %s227 = scalar_lea.sflag [#allocation4], %s226
        %s228 = sand.u32 %s67, 1
        %s229 = smul.addr %s228, 64
        %s230 = scalar_lea.vmem [#allocation3], %s229
        %p231 = pneg %p80
        %p232 = pneg %p77
        %s233 = sand.u32 %s93, 1
        %s234 = scalar_lea.sflag [#allocation7], %s233
        %s235 = sand.u32 %s93, 1
        %s236 = smul.addr %s235, 8
        %s237 = scalar_lea.vmem [#allocation6], %s236
        %p238 = pneg %p106
        %p239 = pneg %p103
        %p240 = pneg %p134
        %p241 = pneg %p131
        %s242 = sand.u32 %s121, 1
        %s243 = scalar_lea.sflag [#allocation5], %s242
        %s244 = sand.u32 %s121, 1
        %s245 = smul.addr %s244, 16
        %s246 = scalar_lea.vmem [#allocation8], %s245
        %v248 = vld [vmem:[%s210] sm:$0xff]
        %v249 = vld [vmem:[%s210 + $0x8] sm:$0xff]
        %v250 = vld [vmem:[%s210 + $0x10] sm:$0xff]
        %v251 = vld [vmem:[%s210 + $0x18] sm:$0xff]
        %v252 = vld [vmem:[%s210 + $0x20] sm:$0xff]
        %v253 = vld [vmem:[%s210 + $0x28] sm:$0xff]
        %v254 = vld [vmem:[%s210 + $0x30] sm:$0xff]
        %v255 = vld [vmem:[%s210 + $0x38] sm:$0xff]
        %v256 = vmul.f32 %v248, %v248
        %v257 = vmul.f32 %v249, %v249
        %v258 = vmul.f32 %v250, %v250
        %v259 = vmul.f32 %v251, %v251
        %v260 = vmul.f32 %v252, %v252
        %v261 = vmul.f32 %v253, %v253
        %v262 = vmul.f32 %v254, %v254
        %v263 = vmul.f32 %v255, %v255
        %v264 = vadd.f32 %v256, %v257
        %v265 = vadd.f32 %v264, %v258
        %v266 = vadd.f32 %v265, %v259
        %v267 = vadd.f32 %v266, %v260
        %v268 = vadd.f32 %v267, %v261
        %v269 = vadd.f32 %v268, %v262
        %v270 = vadd.f32 %v269, %v263
        %v271 = vrot.slane %v270, 4
        %v272 = vadd.f32 %v270, %v271
        %v273 = vrot.slane %v272, 2
        %v274 = vadd.f32 %v272, %v273
        %v275 = vrot.slane %v274, 1
        %v276 = vadd.f32 %v274, %v275
        %v277 = vadd.f32 %v276, 1e-12
        %v278 = vrsqrt.pop %v277
        %v279 = vmul.f32 %v248, %v278
        %v280 = vmul.f32 %v249, %v278
        %v281 = vmul.f32 %v250, %v278
        %v282 = vmul.f32 %v251, %v278
        %v283 = vmul.f32 %v252, %v278
        %v284 = vmul.f32 %v253, %v278
        %v285 = vmul.f32 %v254, %v278
        %v286 = vmul.f32 %v255, %v278
        %v287 = vpack.c.bf16 %v280, %v279
        %v288 = vpack.c.bf16 %v282, %v281
        %v289 = vpack.c.bf16 %v284, %v283
        %v290 = vpack.c.bf16 %v286, %v285
        %v291 = vld [vmem:[%s219] sm:$0xf]
        %v292 = vld [vmem:[%s219 + $0x4] sm:$0xf]
        %s293 = sld [smem:[#allocation2]]
        %v294 = vstv %s293
        %v297 = vunpack.c.l.b16 %v291
        %v298 = vunpack.c.l.b16 %v292
        %v299 = vpack.c.b16 %v298, %v297
        %vm300 = vcmask 523264
        %v302 = vsel %vm300, %v299, 0
        %304 = vmatprep.subr.bf16.mxu0 0
        %305 = vmatpush1.bf16.msra.mxu0 %v287
        %306 = vmatprep.subr.bf16.mxu0 0
        %307 = vmatpush1.bf16.msra.mxu0 %v288
        %308 = vmatprep.subr.bf16.mxu0 0
        %309 = vmatpush1.bf16.msra.mxu0 %v289
        %310 = vmatprep.subr.bf16.mxu0 0
        %311 = vmatpush1.bf16.msra.mxu0 %v290
        %312 = vmatprep.subr.bf16.mxu0 0
        %313 = vmatpush1.bf16.msra.mxu0 0
        %314 = vmatprep.subr.bf16.mxu0 0
        %315 = vmatpush1.bf16.msra.mxu0 0
        %316 = vmatprep.subr.bf16.mxu0 0
        %317 = vmatpush1.bf16.msra.mxu0 0
        %318 = vmatprep.subr.bf16.mxu0 0
        %319 = vmatpush1.bf16.msra.mxu0 0
        %320 = vmatprep.subr.bf16.mxu0 0
        %321 = vmatpush1.bf16.msra.mxu0 0
        %322 = vmatprep.subr.bf16.mxu0 0
        %323 = vmatpush1.bf16.msra.mxu0 0
        %324 = vmatprep.subr.bf16.mxu0 0
        %325 = vmatpush1.bf16.msra.mxu0 0
        %326 = vmatprep.subr.bf16.mxu0 0
        %327 = vmatpush1.bf16.msra.mxu0 0
        %328 = vmatprep.subr.bf16.mxu0 0
        %329 = vmatpush1.bf16.msra.mxu0 0
        %330 = vmatprep.subr.bf16.mxu0 0
        %331 = vmatpush1.bf16.msra.mxu0 0
        %332 = vmatprep.subr.bf16.mxu0 0
        %333 = vmatpush1.bf16.msra.mxu0 0
        %334 = vmatprep.subr.bf16.mxu0 0
        %335 = vmatpush1.bf16.msra.mxu0 0
        %336 = vmatprep.mubr.bf16.mxu0 0
        %337 = vmatmul.mubr.bf16.gmra.mrb[0].mxu0 %v302
        %v338 = vpop.f32.mrb[0].mxu0
        %v339 = vadd.f32 %v294, %v338
        %v340 = vpop.f32.mrb[0].mxu0
        %v341 = vpop.f32.mrb[0].mxu0
        %v342 = vadd.f32 %v294, %v341
        %v343 = vpop.f32.mrb[0].mxu0
        %344 = vdwg.mxu0
        %345 = vst [vmem:[%s246] sm:$0xff] %v339
        %346 = vst [vmem:[%s246 + $0x8] sm:$0xff] %v342
        %s347 = sand.u32 %s121, 1
        %s348 = scalar_lea.sflag [#allocation5], %s347
        %s349 = sand.u32 %s121, 1
        %s350 = smul.addr %s349, 16
        %s351 = scalar_lea.vmem [#allocation8], %s350
        // Predicated region
        $region41: #{contrastive_head.1} parent=31 // pred_check
          %p352 = pneg %p131
        $region42: #{contrastive_head.1} parent=31 // pred_check_branch
          %354 = sbr.rel (%p352) target = $region44
        $region43: #{contrastive_head.1} parent=31 // pred_region
          %s356 = ssub.s32 256, 256
          %357 = vsyncadd %s348, %s356
          %s358 = smul.addr %s28, 4
          %s359 = sadd.s32 %s29, %s358
          %s360 = smul.addr %s359, 128
          %s361 = scalar_lea.hbm %s3, %s360
          %s362 = sshll.u32 %s351, 4
          %s363 = int_to_ptr.vmem [resolvable:$true] %s362
          %368 = dma.vmem_to_hbm [thread:$0]  %s363, 256, %s361, %s348, 128, 256, 8
        $region44: #{contrastive_head.1} parent=31 // pred_fallthru
          _
      $region32: #{contrastive_head.1} parent=5 // pred_fallthru
        _
      %p369 = scmp.le.s32.totalorder 2, %s19
      // Predicated region
      $region45: #{contrastive_head.1} parent=5 // pred_check
        %p370 = pneg %p369
      $region46: #{contrastive_head.1} parent=5 // pred_check_branch
        %372 = sbr.rel (%p370) target = $region48
      $region47: #{contrastive_head.1} parent=5 // pred_region
        %s373 = ssub.s32 %s19, 2
        // Predicated region
        $region49: #{contrastive_head.1} parent=47 // pred_check
          %p374 = pneg %p137
        $region50: #{contrastive_head.1} parent=47 // pred_check_branch
          %376 = sbr.rel (%p374) target = $region52
        $region51: #{contrastive_head.1} parent=47 // pred_region
          %s377 = sand.u32 %s122, 1
          %s378 = scalar_lea.sflag [#allocation5], %s377
          %s379 = sand.u32 %s122, 1
          %s380 = smul.addr %s379, 16
          %s381 = scalar_lea.vmem [#allocation8], %s380
          %382 = dma.done %s378, 256
        $region52: #{contrastive_head.1} parent=47 // pred_fallthru
          _
      $region48: #{contrastive_head.1} parent=5 // pred_fallthru
        _
    $region6: #{contrastive_head.1} parent=1 // loop_footer
      %s23 = sadd.s32 1, %s19
    $region7: #{contrastive_head.1} parent=1 // loop_footer_branch
      %18 = sbr.rel target = $region3
    $region8: #{contrastive_head.1} parent=1 // loop_exit
      _
    %383 = vsyncpa [#allocation4], 1
    %s384 = scalar_lea.sflag [#allocation4], 1
    %385 = vsyncpa %s384, 1
    %386 = vsyncpa [#allocation7], 1
    %s387 = scalar_lea.sflag [#allocation7], 1
    %388 = vsyncpa %s387, 1
    %389 = vsyncpa [#allocation5], 1
    %s390 = scalar_lea.sflag [#allocation5], 1
    %391 = vsyncpa %s390, 1

</llo_original>
